<compile_context>
chip_gen: v6e
topology: v6e:2x2x1
jax: 0.10.0
libtpu: 0.0.40
codegen_flags: <defaults>
</compile_context>

<pallas_src>
import jax
import jax.numpy as jnp
from jax import lax
from jax.experimental import pallas as pl
from jax.experimental.pallas import tpu as pltpu

LANES = 128


def _round_up(x, m):
    return ((x + m - 1) // m) * m


def _sublane_granule(dtype):
    # f32 -> 8, bf16 -> 16, int8/fp8 -> 32 (sub-32-bit dtypes pack sublanes).
    itemsize = jnp.dtype(dtype).itemsize
    return max(8, 32 // max(itemsize, 1))


def _tpu_vmem_capacity_bytes():
    try:
        info = pltpu.get_tpu_info()
        cap = int(getattr(info, "vmem_capacity_bytes", 0) or 0)
        if cap > 0:
            return cap
    except Exception:
        pass
    return 64 * 1024 * 1024  # conservative default (v7x per-TC VMEM)


def _make_rmse_kernel(rows, block_rows, acc_rows, inner, need_mask):
    """rows: valid rows in the (rows, 128) slab; block_rows: rows per block;
    acc_rows: accumulator height (64 when block allows, else 8); inner: length
    of the reduction grid axis; need_mask: whether any step can see rows past
    the valid extent (ragged block tail / over-provisioned clamped grid)."""
    n_sub = block_rows // acc_rows

    def sumsq_block(yhat_ref, y_ref, masked, row0):
        # Stream the block in (acc_rows, 128) slabs; keeps the working set at
        # a few vregs regardless of block size (no full-block f32 temporaries).
        if masked:
            base = lax.broadcasted_iota(jnp.int32, (acc_rows, LANES), 0)

        def body(i, carry):
            r0 = pl.multiple_of(i * acc_rows, acc_rows)
            d = (yhat_ref[pl.ds(r0, acc_rows), :].astype(jnp.float32)
                 - y_ref[pl.ds(r0, acc_rows), :].astype(jnp.float32))
            sq = d * d
            if masked:
                rid = row0 + r0 + base
                # Select (NOT multiply): out-of-range rows may hold NaN/Inf
                # garbage that a multiply-by-zero would poison the sum with.
                sq = jnp.where(rid < rows, sq, 0.0)
            return carry + sq

        return lax.fori_loop(0, n_sub, body,
                             jnp.zeros((acc_rows, LANES), jnp.float32))

    def kernel(yhat_ref, y_ref, out_ref, acc_ref):
        r = pl.program_id(1)

        @pl.when(r == 0)
        def _init():
            acc_ref[...] = jnp.zeros_like(acc_ref)

        if need_mask:
            row0 = (pl.program_id(0) * inner + r) * block_rows
            is_tail = row0 + block_rows > rows

            @pl.when(jnp.logical_not(is_tail))
            def _full():
                acc_ref[...] += sumsq_block(yhat_ref, y_ref, False, 0)

            @pl.when(is_tail)
            def _tail():
                acc_ref[...] += sumsq_block(yhat_ref, y_ref, True, row0)
        else:
            acc_ref[...] += sumsq_block(yhat_ref, y_ref, False, 0)

        @pl.when(r == inner - 1)
        def _finalize():
            # Fold the (acc_rows, 128) accumulator down to one (8, 128) vreg
            # once per parallel chunk; wrapper does the final scalar reduce.
            out_ref[...] = acc_ref[...].reshape(acc_rows // 8, 8, LANES).sum(axis=0)

    return kernel


def rmse_loss(y_hat, y, *, target_block_bytes=None):
    assert y_hat.shape == y.shape, "y_hat and y must have identical shapes"
    n_elems = int(y_hat.size)
    assert n_elems > 0, "empty input"

    flat_hat = y_hat.reshape(-1)
    flat_y = y.reshape(-1)

    # Ragged (<128-element) tail handled in the wrapper: no jnp.pad copy of
    # the full inputs.  Typical NN tensors (n % 128 == 0) take the zero-copy
    # metadata-only reshape fast path below.
    n_main = (n_elems // LANES) * LANES
    tail_ssq = None
    if n_main != n_elems:
        dt = (flat_hat[n_main:].astype(jnp.float32)
              - flat_y[n_main:].astype(jnp.float32))
        tail_ssq = jnp.sum(dt * dt)

    if n_main == 0:
        return jnp.sqrt(tail_ssq / n_elems)

    # Hardware-aware block / VMEM budgets.
    vmem_cap = _tpu_vmem_capacity_bytes()
    big_vmem = vmem_cap >= 100 * 1024 * 1024          # v5e / v6e (128 MiB, 1 TC)
    if target_block_bytes is None:
        target_block_bytes = (8 << 20) if big_vmem else (4 << 20)
    vmem_limit = (64 << 20) if big_vmem else (40 << 20)

    rows = n_main // LANES
    if n_main == n_elems:
        slab_hat = flat_hat.reshape(rows, LANES)
        slab_y = flat_y.reshape(rows, LANES)
    else:
        # TODO(synk): the prefix slice may still materialize one copy on the
        # rare ragged path; a 1-D-layout kernel would make it fully zero-copy.
        slab_hat = flat_hat[:n_main].reshape(rows, LANES)
        slab_y = flat_y[:n_main].reshape(rows, LANES)

    itemsize = max(jnp.dtype(y_hat.dtype).itemsize, jnp.dtype(y.dtype).itemsize)
    granule = max(_sublane_granule(y_hat.dtype), _sublane_granule(y.dtype))
    target_rows = max(granule,
                      (target_block_bytes // (LANES * itemsize)) // granule * granule)
    block_rows = min(target_rows, _round_up(rows, granule))
    # 8 accumulator vregs when the block allows it (breaks the serial VPU add
    # chain); otherwise a single vreg-shaped accumulator for small blocks.
    acc_rows = 64 if block_rows % 64 == 0 else 8
    n_blocks = pl.cdiv(rows, block_rows)

    # 2-way parallel leading axis only where there are 2 TensorCores (v7x-ish);
    # on single-TC chips it only adds a wasted clamped step for odd n_blocks.
    num_parallel = 2 if (not big_vmem and n_blocks >= 2) else 1
    inner = pl.cdiv(n_blocks, num_parallel)
    need_clamp = (num_parallel * inner != n_blocks)
    need_mask = (num_parallel * inner * block_rows != rows)

    if need_clamp:
        # Over-provisioned steps re-read the last valid block (cheap) and are
        # fully masked inside the kernel.
        def in_map(p, r):
            return (jnp.minimum(p * inner + r, n_blocks - 1), 0)
    else:
        def in_map(p, r):
            return (p * inner + r, 0)

    kernel = _make_rmse_kernel(rows, block_rows, acc_rows, inner, need_mask)

    partials = pl.pallas_call(
        kernel,
        out_shape=jax.ShapeDtypeStruct((num_parallel * 8, LANES), jnp.float32),
        grid_spec=pltpu.PrefetchScalarGridSpec(
            num_scalar_prefetch=0,
            grid=(num_parallel, inner),
            in_specs=[
                pl.BlockSpec((block_rows, LANES), in_map),
                pl.BlockSpec((block_rows, LANES), in_map),
            ],
            out_specs=pl.BlockSpec((8, LANES), lambda p, r: (p, 0)),
            scratch_shapes=[pltpu.VMEM((acc_rows, LANES), jnp.float32)],
        ),
        # TODO(synk): on v7x verify "parallel" actually shards across both TCs
        # in the trace; if not, switch the leading axis to pltpu.CORE_PARALLEL.
        compiler_params=pltpu.CompilerParams(
            dimension_semantics=("parallel", "arbitrary"),
            vmem_limit_bytes=vmem_limit,
        ),
    )(slab_hat, slab_y)

    total = jnp.sum(partials)
    if tail_ssq is not None:
        total = total + tail_ssq
    # f32 mean is fine for typical sizes; for n >~ 1e9 scale partials by 1/n
    # inside the kernel instead.
    return jnp.sqrt(total / n_elems)


if __name__ == "__main__":
    key = jax.random.PRNGKey(0)

    def _check(shape, k, **kw):
        k1, k2 = jax.random.split(k)
        y_hat = jax.random.normal(k1, shape, dtype=jnp.float32)
        y = jax.random.normal(k2, shape, dtype=jnp.float32)
        loss = rmse_loss(y_hat, y, **kw)
        jax.block_until_ready(loss)
        ref = jnp.sqrt(jnp.mean((y_hat - y) ** 2))
        assert jnp.allclose(loss, ref, rtol=1e-5, atol=1e-6), (shape, loss, ref)
        return loss

    keys = jax.random.split(key, 5)
    _check((2, 4, 16, 16), keys[0])     # primary NCHW case, exact-fit fast path
    _check((2, 3, 7, 5), keys[1])       # ragged count -> kernel prefix + wrapper tail
    _check((3, 5), keys[2])             # n < 128 -> pure wrapper path
    # Forced-small blocks to exercise multi-block accumulation, the 64-row
    # accumulator, masking and clamping on small test tensors (the default
    # block sizes would cover these in a single block).
    _check((10, 4, 128, 128), keys[3], target_block_bytes=256 * 1024)
    _check((5, 3, 9, 128), keys[4], target_block_bytes=16 * 1024)

    print("KERNEL_OK")
</pallas_src>

<mosaic_0001>
module attributes {stable_mosaic.version = 11 : i64} {
  func.func @kernel(%arg0: i32, %arg1: i32, %arg2: memref<16x128xf32, #tpu.memory_space<vmem>>, %arg3: memref<16x128xf32, #tpu.memory_space<vmem>>, %arg4: memref<8x128xf32, #tpu.memory_space<vmem>>, %arg5: memref<8x128xf32, #tpu.memory_space<vmem>>) attributes {dimension_semantics = [#tpu.dimension_semantics<parallel>, #tpu.dimension_semantics<arbitrary>], iteration_bounds = array<i64: 1, 1>, scalar_prefetch = 0 : i64, scratch_operands = 1 : i64, tpu.core_type = #tpu.core_type<tc>, window_params = [{transform_indices = @transform_0, window_bounds = array<i64: 16, 128>}, {transform_indices = @transform_1, window_bounds = array<i64: 16, 128>}, {transform_indices = @transform_2, window_bounds = array<i64: 8, 128>}]} {
    %c0_i32 = arith.constant 0 : i32
    %0 = arith.cmpi eq, %arg1, %c0_i32 : i32
    %1 = arith.extui %0 : i1 to i32
    %c0_i32_0 = arith.constant 0 : i32
    %2 = arith.cmpi ne, %1, %c0_i32_0 : i32
    scf.if %2 {
      %cst_8 = arith.constant 0.000000e+00 : f32
      %12 = vector.broadcast %cst_8 : f32 to vector<8x128xf32>
      %c0_9 = arith.constant 0 : index
      %c0_10 = arith.constant 0 : index
      %13 = vector.load %arg5[%c0_9, %c0_10] : memref<8x128xf32, #tpu.memory_space<vmem>>, vector<8x128xf32>
      tpu.vector_store %arg5[%c0_9, %c0_10], %12 {strides = array<i32>} : memref<8x128xf32, #tpu.memory_space<vmem>>, vector<8x128xf32>,
    } else {
    }
    %c0 = arith.constant 0 : index
    %c0_1 = arith.constant 0 : index
    %3 = vector.load %arg5[%c0, %c0_1] : memref<8x128xf32, #tpu.memory_space<vmem>>, vector<8x128xf32>
    %cst = arith.constant 0.000000e+00 : f32
    %4 = vector.broadcast %cst : f32 to vector<8x128xf32>
    %c0_i32_2 = arith.constant 0 : i32
    %c2_i32 = arith.constant 2 : i32
    %5 = arith.addi %c0_i32_2, %c2_i32 : i32
    %c1_i32 = arith.constant 1 : i32
    %6 = scf.for %arg6 = %c0_i32_2 to %5 step %c1_i32 iter_args(%arg7 = %4) -> (vector<8x128xf32>)  : i32 {
      %c8_i32 = arith.constant 8 : i32
      %12 = arith.muli %arg6, %c8_i32 : i32
      %13 = tpu.assume_multiple %12, 8 : i32
      %14 = arith.index_cast %13 : i32 to index
      %c0_8 = arith.constant 0 : index
      %15 = vector.load %arg2[%14, %c0_8] : memref<16x128xf32, #tpu.memory_space<vmem>>, vector<8x128xf32>
      %16 = arith.index_cast %13 : i32 to index
      %c0_9 = arith.constant 0 : index
      %17 = vector.load %arg3[%16, %c0_9] : memref<16x128xf32, #tpu.memory_space<vmem>>, vector<8x128xf32>
      %18 = arith.subf %15, %17 : vector<8x128xf32>
      %19 = arith.mulf %18, %18 : vector<8x128xf32>
      %20 = arith.addf %arg7, %19 : vector<8x128xf32>
      scf.yield %20 : vector<8x128xf32>
    }
    %c2_i32_3 = arith.constant 2 : i32
    %7 = arith.addf %3, %6 : vector<8x128xf32>
    %c0_4 = arith.constant 0 : index
    %c0_5 = arith.constant 0 : index
    %8 = vector.load %arg5[%c0_4, %c0_5] : memref<8x128xf32, #tpu.memory_space<vmem>>, vector<8x128xf32>
    tpu.vector_store %arg5[%c0_4, %c0_5], %7 {strides = array<i32>} : memref<8x128xf32, #tpu.memory_space<vmem>>, vector<8x128xf32>,
    %c0_i32_6 = arith.constant 0 : i32
    %9 = arith.cmpi eq, %arg1, %c0_i32_6 : i32
    %10 = arith.extui %9 : i1 to i32
    %c0_i32_7 = arith.constant 0 : i32
    %11 = arith.cmpi ne, %10, %c0_i32_7 : i32
    scf.if %11 {
      %c0_8 = arith.constant 0 : index
      %c0_9 = arith.constant 0 : index
      %12 = vector.load %arg5[%c0_8, %c0_9] : memref<8x128xf32, #tpu.memory_space<vmem>>, vector<8x128xf32>
      %13 = vector.shape_cast %12 : vector<8x128xf32> to vector<1x8x128xf32>
      %cst_10 = arith.constant dense<0.000000e+00> : vector<8x128xf32>
      %14 = vector.multi_reduction <add>, %13, %cst_10 [0] : vector<1x8x128xf32> to vector<8x128xf32>
      %c0_11 = arith.constant 0 : index
      %c0_12 = arith.constant 0 : index
      %15 = vector.load %arg4[%c0_11, %c0_12] : memref<8x128xf32, #tpu.memory_space<vmem>>, vector<8x128xf32>
      tpu.vector_store %arg4[%c0_11, %c0_12], %14 {strides = array<i32>} : memref<8x128xf32, #tpu.memory_space<vmem>>, vector<8x128xf32>,
    } else {
    }
    return
  }
  func.func @transform_0(%arg0: i32, %arg1: i32) -> (i32, i32) {
    %c1_i32 = arith.constant 1 : i32
    %0 = arith.muli %arg0, %c1_i32 : i32
    %1 = arith.addi %0, %arg1 : i32
    %c0_i32 = arith.constant 0 : i32
    %c0_i32_0 = arith.constant 0 : i32
    return %1, %c0_i32 : i32, i32
  }
  func.func @transform_1(%arg0: i32, %arg1: i32) -> (i32, i32) {
    %c1_i32 = arith.constant 1 : i32
    %0 = arith.muli %arg0, %c1_i32 : i32
    %1 = arith.addi %0, %arg1 : i32
    %c0_i32 = arith.constant 0 : i32
    %c0_i32_0 = arith.constant 0 : i32
    return %1, %c0_i32 : i32, i32
  }
  func.func @transform_2(%arg0: i32, %arg1: i32) -> (i32, i32) {
    %c0_i32 = arith.constant 0 : i32
    %c0_i32_0 = arith.constant 0 : i32
    return %arg0, %c0_i32 : i32, i32
  }
}

</mosaic_0001>

<llo_original>
// kernel: tpu_custom_call.1
$region0: #{tpu_custom_call.1}
  #allocation0 [shape = 'u32[]', space=smem, size = 0x4, offset = 0x4, fixed_abs, tag = 'smem constant byte address 0x4 - core index']
  #allocation1 [shape = 'u32[144,128]{1,0:T(1,128)}', space=vmem, size = 0x12000, scoped, tag = 'internal scratch']
  #allocation2 [shape = 'f32[8,128]{1,0:T(8,128)}', space=vmem, size = 0x1000, scoped, tag = 'scratch operand']
  %s0 = inlined_call_operand.hbm [shape: f32[16,128], index: 0, kind: input, shape index: {}]
  %s1 = inlined_call_operand.hbm [shape: f32[16,128], index: 1, kind: input, shape index: {}]
  %s2 = inlined_call_operand.hbm [shape: f32[8,128], index: 2, kind: output, shape index: {}]
  %s3 = sld [smem:[#allocation0]]
  $region41: #{tpu_custom_call.1} parent=0
    _
  %s5 = ssub.s32 1, %s3
  %s6 = scalar_select 0, %s5, %s3
  $region1: #{tpu_custom_call.1} parent=0
    #allocation3 [shape = 'u8[8192]{0}', space=vmem, size = 0x2000, scoped, tag = 'input window, operand 0, single buffered']
    #allocation4 [shape = 's32[1]{0}', space=sflag, size = 0x4, scoped, tag = 'scoped memory for tpu_custom_call.1']
    #allocation5 [shape = 's32[1]{0}', space=sflag, size = 0x4, scoped, tag = 'scoped memory for tpu_custom_call.1']
    #allocation6 [shape = 'u8[8192]{0}', space=vmem, size = 0x2000, scoped, tag = 'input window, operand 1, single buffered']
    #allocation7 [shape = 's32[1]{0}', space=sflag, size = 0x4, scoped, tag = 'scoped memory for tpu_custom_call.1']
    #allocation8 [shape = 'u8[4096]{0}', space=vmem, size = 0x1000, scoped, tag = 'output window, operand 0, single buffered']
    %7 = vsyncpa [#allocation4], 0
    %8 = vsyncpa [#allocation7], 0
    %9 = vsyncpa [#allocation5], 0
    // Predicated region
    $region2: #{tpu_custom_call.1} parent=1 // pred_check
      _
    $region3: #{tpu_custom_call.1} parent=1 // pred_check_branch
      %11 = sbr.rel (0) target = $region5
    $region4: #{tpu_custom_call.1} parent=1 // pred_region
      %s12 = sadd.s32 0, 0
      %s13 = smul.u32 2, %s12
      %s15 = ssub.s32 256, 256
      %16 = vsyncadd [#allocation4], %s15
      %s17 = smul.addr %s13, 128
      %s18 = scalar_lea.hbm %s0, %s17
      %s19 = sshll.u32 [#allocation3], 4
      %s20 = int_to_ptr.vmem [resolvable:$true] %s19
      %25 = dma.hbm_to_vmem [thread:$0]  %s18, 256, %s20, [#allocation4], 128, 128, 8
    $region5: #{tpu_custom_call.1} parent=1 // pred_fallthru
      _
    // Predicated region
    $region6: #{tpu_custom_call.1} parent=1 // pred_check
      _
    $region7: #{tpu_custom_call.1} parent=1 // pred_check_branch
      %27 = sbr.rel (0) target = $region9
    $region8: #{tpu_custom_call.1} parent=1 // pred_region
      %s28 = sadd.s32 0, 0
      %s29 = smul.u32 2, %s28
      %s31 = ssub.s32 256, 256
      %32 = vsyncadd [#allocation7], %s31
      %s33 = smul.addr %s29, 128
      %s34 = scalar_lea.hbm %s1, %s33
      %s35 = sshll.u32 [#allocation6], 4
      %s36 = int_to_ptr.vmem [resolvable:$true] %s35
      %41 = dma.hbm_to_vmem [thread:$0]  %s34, 256, %s36, [#allocation7], 128, 128, 8
    $region9: #{tpu_custom_call.1} parent=1 // pred_fallthru
      _
    // Predicated region
    $region10: #{tpu_custom_call.1} parent=1 // pred_check
      _
    $region11: #{tpu_custom_call.1} parent=1 // pred_check_branch
      %43 = sbr.rel (0) target = $region13
    $region12: #{tpu_custom_call.1} parent=1 // pred_region
      %44 = dma.done [#allocation4], 256
    $region13: #{tpu_custom_call.1} parent=1 // pred_fallthru
      _
    // Predicated region
    $region14: #{tpu_custom_call.1} parent=1 // pred_check
      _
    $region15: #{tpu_custom_call.1} parent=1 // pred_check_branch
      %46 = sbr.rel (0) target = $region17
    $region16: #{tpu_custom_call.1} parent=1 // pred_region
      %47 = dma.done [#allocation7], 256
    $region17: #{tpu_custom_call.1} parent=1 // pred_fallthru
      _
    %s48 = sadd.s32 0, 0
    %s49 = smul.u32 2, %s48
    %s50 = sadd.s32 0, 0
    %s51 = smul.u32 2, %s50
    %p52 = scmp.eq.s32.totalorder 0, 0
    // Predicated region
    $region18: #{tpu_custom_call.1} parent=1 // pred_check
      %p53 = pneg %p52
    $region19: #{tpu_custom_call.1} parent=1 // pred_check_branch
      %55 = sbr.rel (%p53) target = $region21
    $region20: #{tpu_custom_call.1} parent=1 // pred_region
      %56 = vst [vmem:[#allocation2] sm:$0xff] 0.0
    $region21: #{tpu_custom_call.1} parent=1 // pred_fallthru
      _
    %v57 = vld [vmem:[#allocation2] sm:$0xff]
    loop: start=0, step=1, limit=2
    $region22: #{tpu_custom_call.1} parent=1 // loop_pre_header
      _
    $region23: #{tpu_custom_call.1} parent=1 // loop_header
      %s59 = sphi 0, %s63
      %p60 = scmp.ge.s32.totalorder %s59, 2
      %v64 = vphi 0.0, %v72
    $region24: #{tpu_custom_call.1} parent=1 // loop_header_branch
      %62 = sbr.rel (%p60) target = $region28
    $region25: #{tpu_custom_call.1} parent=1 // loop_body
      %s65 = smul.u32 %s59, 8
      %s66 = scalar_lea.vmem [#allocation3], %s65
      %v67 = vld [vmem:[%s66] sm:$0xff]
      %s68 = scalar_lea.vmem [#allocation6], %s65
      %v69 = vld [vmem:[%s68] sm:$0xff]
      %v70 = vsub.f32 %v67, %v69
      %v71 = vmul.f32 %v70, %v70
      %v72 = vadd.f32 %v64, %v71
    $region26: #{tpu_custom_call.1} parent=1 // loop_footer
      %s63 = sadd.s32 1, %s59
    $region27: #{tpu_custom_call.1} parent=1 // loop_footer_branch
      %58 = sbr.rel target = $region23
    $region28: #{tpu_custom_call.1} parent=1 // loop_exit
      _
    %v73 = vadd.f32 %v57, %v64
    %74 = vst [vmem:[#allocation2] sm:$0xff] %v73
    // Predicated region
    $region29: #{tpu_custom_call.1} parent=1 // pred_check
      %p75 = pneg %p52
    $region30: #{tpu_custom_call.1} parent=1 // pred_check_branch
      %77 = sbr.rel (%p75) target = $region32
    $region31: #{tpu_custom_call.1} parent=1 // pred_region
      %v78 = vld [vmem:[#allocation2] sm:$0xff]
      %v79 = vadd.f32 %v78, 0.0
      %80 = vst [vmem:[#allocation8] sm:$0xff] %v79
    $region32: #{tpu_custom_call.1} parent=1 // pred_fallthru
      _
    // Predicated region
    $region33: #{tpu_custom_call.1} parent=1 // pred_check
      _
    $region34: #{tpu_custom_call.1} parent=1 // pred_check_branch
      %82 = sbr.rel (0) target = $region36
    $region35: #{tpu_custom_call.1} parent=1 // pred_region
      %s84 = ssub.s32 128, 128
      %85 = vsyncadd [#allocation5], %s84
      %s87 = sshll.u32 [#allocation8], 4
      %s88 = int_to_ptr.vmem [resolvable:$true] %s87
      %90 = dma.vmem_to_hbm [thread:$0]  %s88, 128, %s2, [#allocation5]
    $region36: #{tpu_custom_call.1} parent=1 // pred_fallthru
      _
    // Predicated region
    $region37: #{tpu_custom_call.1} parent=1 // pred_check
      _
    $region38: #{tpu_custom_call.1} parent=1 // pred_check_branch
      %92 = sbr.rel (0) target = $region40
    $region39: #{tpu_custom_call.1} parent=1 // pred_region
      %93 = dma.done [#allocation5], 128
    $region40: #{tpu_custom_call.1} parent=1 // pred_fallthru
      _
    %94 = vsyncpa [#allocation4], 1
    %95 = vsyncpa [#allocation7], 1
    %96 = vsyncpa [#allocation5], 1

</llo_original>
